<compile_context>
chip_gen: v6e
topology: v6e:2x2x1
jax: 0.10.0
libtpu: 0.0.40
codegen_flags: <defaults>
</compile_context>

<pallas_src>
import functools

import jax
import jax.numpy as jnp
from jax.experimental import pallas as pl
from jax.experimental.pallas import tpu as pltpu


def _vmem_limit_bytes():
    # ~60% of physical VMEM: ~38 MiB on v7x (64 MiB/TC), ~77 MiB on v5e/v6e (128 MiB).
    try:
        cap = int(pltpu.get_tpu_info().vmem_capacity_bytes)
    except Exception:
        cap = 64 * 1024 * 1024
    return max(32 * 1024 * 1024, min(int(cap * 0.6), 96 * 1024 * 1024))


_VMEM_LIMIT = _vmem_limit_bytes()
_COUT_TILE = 256           # bounds the f32 accumulator / 512-channel weight tiles
_ROW_BATCH_TARGET = 2048   # target M = R*W per row-block matmul (fills the 256-row MXU)


def _pick_rows_per_iter(H, W, *, pool, target=_ROW_BATCH_TARGET):
    """Largest R dividing H (even if pooling is fused) with R*W <= target."""
    step = 2 if pool else 1
    best = step
    for r in range(step, H + 1, step):
        if H % r == 0 and r * W <= target:
            best = r
    return best


# ---------------------------------------------------------------------------
# Kernel
# ---------------------------------------------------------------------------
def _conv_relu_kernel(x_ref, w_ref, b_ref, o_ref, *,
                      rows_per_iter, fuse_pool, pre_im2col):
    # pre_im2col=False:
    #   x_ref: (1, H+2, W+2, Cin)  zero-padded bf16 input (one batch element)
    #   w_ref: (9, Cin, Tc)        bf16 taps, tap index = dy*3 + dx
    # pre_im2col=True (Cin=3 first layer, wrapper-side im2col):
    #   x_ref: (1, H, W, K)        bf16 patches, K = 9*Cin
    #   w_ref: (K, Tc)             bf16 flattened filter
    # b_ref : (1, Tc)              f32 bias tile
    # o_ref : (1, Ho+2, Wo+2, Tc)  bf16 zero-padded output tile (pooled if fuse_pool)
    Tc = o_ref.shape[3]
    if pre_im2col:
        H, W, K = x_ref.shape[1], x_ref.shape[2], x_ref.shape[3]
    else:
        H, W = x_ref.shape[1] - 2, x_ref.shape[2] - 2
    R = rows_per_iter
    Ro = R // 2 if fuse_pool else R
    Wo = W // 2 if fuse_pool else W
    M = R * W

    # Zero the whole padded output block once (VMEM-only traffic); the interior is
    # overwritten below, leaving the halo ring at zero for the next layer's SAME pad.
    o_ref[...] = jnp.zeros_like(o_ref)

    # Bias-initialized accumulator template, hoisted out of the row-block loop.
    bias = jnp.broadcast_to(b_ref[...].astype(jnp.float32), (M, Tc))

    def row_block(r):
        row0 = r * R
        if not isinstance(row0, int):
            row0 = pl.multiple_of(row0, R)
        if pre_im2col:
            patch = x_ref[0, pl.ds(row0, R), :, :].reshape(M, K)
            acc = bias + jnp.dot(patch, w_ref[...],
                                 preferred_element_type=jnp.float32)
        else:
            acc = bias                                    # carried value: no VMEM RMW
            for dy in range(3):                           # one slab load per dy,
                rows = x_ref[0, pl.ds(row0 + dy, R), :, :]   # reused by 3 dx taps
                for dx in range(3):
                    patch = rows[:, dx:dx + W, :].reshape(M, rows.shape[-1])
                    acc = acc + jnp.dot(patch, w_ref[dy * 3 + dx],
                                        preferred_element_type=jnp.float32)
        out = jnp.maximum(acc, 0.0).reshape(R, W, Tc)     # bias + ReLU fused in f32
        if fuse_pool:                                     # fused 2x2/2 max-pool
            out = jnp.max(out.reshape(Ro, 2, W, Tc), axis=1)      # row pairs
            out = jnp.max(out.reshape(Ro, Wo, 2, Tc), axis=2)     # column pairs
        out_row0 = r * Ro + 1
        o_ref[0, pl.ds(out_row0, Ro), pl.ds(1, Wo), :] = out.astype(o_ref.dtype)

    trips = H // R
    if trips == 1:
        row_block(0)
    else:
        jax.lax.fori_loop(0, trips,
                          lambda r, c: (row_block(r), c)[1], 0,
                          unroll=bool(trips <= 8))


# ---------------------------------------------------------------------------
# Wrappers (pallas_call setup)
# ---------------------------------------------------------------------------
def _launch_conv(kernel, x, wk, b2, *, out_shape, x_block, w_block, o_block,
                 num_cout_blocks, batch, weight_resident):
    Tc = o_block[-1]
    if weight_resident:
        # Cout-tile outer: the (large) weight tile stays VMEM-resident across batch.
        grid = (num_cout_blocks, batch)
        x_map = lambda co, n: (n, 0, 0, 0)
        w_map = (lambda co, n: (0, 0, co)) if len(w_block) == 3 else (lambda co, n: (0, co))
        b_map = lambda co, n: (0, co)
        o_map = lambda co, n: (n, 0, 0, co)
    else:
        # Batch outer: the (large) activation block stays resident across Cout tiles.
        grid = (batch, num_cout_blocks)
        x_map = lambda n, co: (n, 0, 0, 0)
        w_map = (lambda n, co: (0, 0, co)) if len(w_block) == 3 else (lambda n, co: (0, co))
        b_map = lambda n, co: (0, co)
        o_map = lambda n, co: (n, 0, 0, co)
    return pl.pallas_call(
        kernel,
        out_shape=out_shape,
        grid=grid,
        in_specs=[pl.BlockSpec(x_block, x_map),
                  pl.BlockSpec(w_block, w_map),
                  pl.BlockSpec((1, Tc), b_map)],
        out_specs=pl.BlockSpec(o_block, o_map),
        compiler_params=pltpu.CompilerParams(
            dimension_semantics=("parallel", "parallel"),
            vmem_limit_bytes=_VMEM_LIMIT),
    )(x, wk, b2)


def conv3x3_relu_padded(xpad, w, b, *, pool=False):
    """3x3 SAME conv + bias + ReLU (+ optional fused 2x2/2 max-pool).

    xpad: (N, H+2, W+2, Cin) zero-padded bf16 NHWC activation.
    Returns the next layer's zero-padded activation (N, Ho+2, Wo+2, Cout) in bf16,
    with (Ho, Wo) = (H//2, W//2) if pool else (H, W).
    """
    N, Hp2, Wp2, Cin = xpad.shape
    H, W = Hp2 - 2, Wp2 - 2
    Cout = w.shape[-1]
    Tc = min(Cout, _COUT_TILE)
    assert Cout % Tc == 0, f"Cout={Cout} must divide into channel tiles of {Tc}"
    if pool:
        assert H % 2 == 0 and W % 2 == 0, "fused max-pool needs even spatial dims"
    Ho, Wo = (H // 2, W // 2) if pool else (H, W)
    R = _pick_rows_per_iter(H, W, pool=pool)

    w9 = w.astype(jnp.bfloat16).reshape(9, Cin, Cout)
    b2 = b.astype(jnp.float32).reshape(1, Cout)
    kernel = functools.partial(_conv_relu_kernel, rows_per_iter=R,
                               fuse_pool=pool, pre_im2col=False)
    # Deep small-spatial layers: keep the bigger weight tile resident across batch.
    weight_resident = (9 * Tc) > (Hp2 * Wp2)
    return _launch_conv(
        kernel, xpad, w9, b2,
        out_shape=jax.ShapeDtypeStruct((N, Ho + 2, Wo + 2, Cout), jnp.bfloat16),
        x_block=(1, Hp2, Wp2, Cin), w_block=(9, Cin, Tc),
        o_block=(1, Ho + 2, Wo + 2, Tc),
        num_cout_blocks=Cout // Tc, batch=N, weight_resident=weight_resident)


def conv3x3_relu_first(x, w, b):
    """First VGG conv (Cin=3): wrapper-side im2col -> one K=27 MXU matmul per row block."""
    N, H, W, Cin = x.shape
    Cout = w.shape[-1]
    K = 9 * Cin
    Tc = min(Cout, _COUT_TILE)
    assert Cout % Tc == 0
    xb = jnp.pad(x.astype(jnp.bfloat16), ((0, 0), (1, 1), (1, 1), (0, 0)))
    patches = jnp.concatenate(
        [xb[:, dy:dy + H, dx:dx + W, :] for dy in range(3) for dx in range(3)], axis=-1)
    wk = w.astype(jnp.bfloat16).reshape(K, Cout)
    b2 = b.astype(jnp.float32).reshape(1, Cout)
    R = _pick_rows_per_iter(H, W, pool=False)
    kernel = functools.partial(_conv_relu_kernel, rows_per_iter=R,
                               fuse_pool=False, pre_im2col=True)
    return _launch_conv(
        kernel, patches, wk, b2,
        out_shape=jax.ShapeDtypeStruct((N, H + 2, W + 2, Cout), jnp.bfloat16),
        x_block=(1, H, W, K), w_block=(K, Tc),
        o_block=(1, H + 2, W + 2, Tc),
        num_cout_blocks=Cout // Tc, batch=N, weight_resident=False)


# ---------------------------------------------------------------------------
# VGG19 features[0:30] parameters & forward (slices 1..5)
# ---------------------------------------------------------------------------
_VGG_CFG = [(3, 64), (64, 64), (64, 128), (128, 128), (128, 256),
            (256, 256), (256, 256), (256, 256), (256, 512),
            (512, 512), (512, 512), (512, 512), (512, 512)]
# Convs followed directly by a MaxPool2d in features[0:30] (pool fused into epilogue).
_FUSE_POOL = [False, True, False, True, False, False, False, True,
              False, False, False, True, False]
# Conv index whose (ReLU'd) output is h_relu1..h_relu5.
_SLICE_ENDS = {0: 0, 2: 1, 4: 2, 8: 3, 12: 4}


def init_vgg19_params(key):
    # TODO(synk): torchvision pretrained VGG19 weights cannot be loaded here (no file /
    # network access); deterministic He-style init with the exact pretrained shapes.
    params = []
    for cin, cout in _VGG_CFG:
        key, kw, kb = jax.random.split(key, 3)
        std = (2.0 / (9.0 * cin)) ** 0.5
        w = jax.random.normal(kw, (3, 3, cin, cout), jnp.float32) * std
        b = jax.random.normal(kb, (cout,), jnp.float32) * 0.01
        params.append((w, b))
    return params


def vgg19_slices_forward(x_nchw, params):
    """Returns [h_relu1, ..., h_relu5] in NCHW float32, matching the PyTorch module."""
    x = jnp.transpose(x_nchw, (0, 2, 3, 1)).astype(jnp.float32)   # NCHW -> NHWC
    feats = [None] * 5
    h = None
    for idx, ((w, b), pool) in enumerate(zip(params, _FUSE_POOL)):
        if idx == 0:
            h = conv3x3_relu_first(x, w, b)                # padded (N, H+2, W+2, 64)
        else:
            h = conv3x3_relu_padded(h, w, b, pool=pool)    # padded, consumed directly
        if idx in _SLICE_ENDS:
            feats[_SLICE_ENDS[idx]] = h
    # Crop the halo ring and return NCHW f32, matching the PyTorch module.
    return [jnp.transpose(f[:, 1:-1, 1:-1, :], (0, 3, 1, 2)).astype(jnp.float32)
            for f in feats]


# ---------------------------------------------------------------------------
# Plain-JAX reference with matching bf16-activation / f32-accumulation numerics.
# ---------------------------------------------------------------------------
def _conv_ref(x, w, b):
    y = jax.lax.conv_general_dilated(
        x.astype(jnp.bfloat16), w.astype(jnp.bfloat16),
        window_strides=(1, 1), padding=((1, 1), (1, 1)),
        dimension_numbers=("NHWC", "HWIO", "NHWC"),
        preferred_element_type=jnp.float32)
    return jnp.maximum(y + b.astype(jnp.float32), 0.0).astype(jnp.bfloat16)


def _pool_ref(x):
    N, H, W, C = x.shape
    return jnp.max(x.reshape(N, H // 2, 2, W // 2, 2, C), axis=(2, 4))


def _vgg_slices_ref(x_nhwc, params):
    feats = []
    h = x_nhwc
    for idx, ((w, b), pool) in enumerate(zip(params, _FUSE_POOL)):
        h = _conv_ref(h, w, b)
        if idx in _SLICE_ENDS:
            feats.append(h)
        if pool:
            h = _pool_ref(h)
    return feats


# ---------------------------------------------------------------------------
if __name__ == "__main__":
    key = jax.random.PRNGKey(0)
    kx, kp = jax.random.split(key)
    # VGG19 needs 3 input channels; 16x16 spatial survives the 4 pools in features[0:30].
    x = jax.random.normal(kx, (2, 3, 16, 16), jnp.float32)
    params = init_vgg19_params(kp)

    outs = jax.block_until_ready(vgg19_slices_forward(x, params))

    expected = [(2, 64, 16, 16), (2, 128, 8, 8), (2, 256, 4, 4),
                (2, 512, 2, 2), (2, 512, 1, 1)]
    got = [tuple(o.shape) for o in outs]
    assert got == expected, f"shape mismatch: {got} vs {expected}"
    assert all(bool(jnp.all(jnp.isfinite(o))) for o in outs)

    # Validate against the plain-JAX (XLA conv) reference (same bf16/f32 mix).
    x_nhwc = jnp.transpose(x, (0, 2, 3, 1)).astype(jnp.float32)
    refs = _vgg_slices_ref(x_nhwc, params)
    refs = [jnp.transpose(r, (0, 3, 1, 2)).astype(jnp.float32) for r in refs]
    for idx, (o, r) in enumerate(zip(outs, refs)):
        err = float(jnp.max(jnp.abs(o - r)))
        scale = float(jnp.max(jnp.abs(r)))
        assert err <= 0.1 * scale + 0.1, f"slice{idx + 1} mismatch: err={err} scale={scale}"

    print("KERNEL_OK")
</pallas_src>

<mosaic_0001>
module attributes {stable_mosaic.version = 11 : i64} {
  func.func @_conv_relu_kernel(%arg0: i32, %arg1: i32, %arg2: memref<1x16x16x27xbf16, #tpu.memory_space<vmem>>, %arg3: memref<27x64xbf16, #tpu.memory_space<vmem>>, %arg4: memref<1x64xf32, #tpu.memory_space<vmem>>, %arg5: memref<1x18x18x64xbf16, #tpu.memory_space<vmem>>) attributes {dimension_semantics = [#tpu.dimension_semantics<parallel>, #tpu.dimension_semantics<parallel>], iteration_bounds = array<i64: 2, 1>, scalar_prefetch = 0 : i64, scratch_operands = 0 : i64, tpu.core_type = #tpu.core_type<tc>, window_params = [{transform_indices = @transform_0, window_bounds = array<i64: 1, 16, 16, 27>}, {transform_indices = @transform_1, window_bounds = array<i64: 27, 64>}, {transform_indices = @transform_2, window_bounds = array<i64: 1, 64>}, {transform_indices = @transform_3, window_bounds = array<i64: 1, 18, 18, 64>}]} {
    %cst = arith.constant 0.000000e+00 : bf16
    %0 = vector.broadcast %cst : bf16 to vector<1x18x18x64xbf16>
    %c0 = arith.constant 0 : index
    %c0_0 = arith.constant 0 : index
    %c0_1 = arith.constant 0 : index
    %c0_2 = arith.constant 0 : index
    %1 = vector.load %arg5[%c0, %c0_0, %c0_1, %c0_2] : memref<1x18x18x64xbf16, #tpu.memory_space<vmem>>, vector<1x18x18x64xbf16>
    tpu.vector_store %arg5[%c0, %c0_0, %c0_1, %c0_2], %0 {strides = array<i32>} : memref<1x18x18x64xbf16, #tpu.memory_space<vmem>>, vector<1x18x18x64xbf16>,
    %c0_3 = arith.constant 0 : index
    %c0_4 = arith.constant 0 : index
    %2 = vector.load %arg4[%c0_3, %c0_4] : memref<1x64xf32, #tpu.memory_space<vmem>>, vector<1x64xf32>
    %3 = vector.shape_cast %2 : vector<1x64xf32> to vector<1x64xf32>
    %4 = vector.broadcast %3 : vector<1x64xf32> to vector<256x64xf32>
    %c0_5 = arith.constant 0 : index
    %c0_6 = arith.constant 0 : index
    %c0_7 = arith.constant 0 : index
    %c0_8 = arith.constant 0 : index
    %5 = vector.load %arg2[%c0_5, %c0_6, %c0_7, %c0_8] : memref<1x16x16x27xbf16, #tpu.memory_space<vmem>>, vector<1x16x16x27xbf16>
    %6 = vector.shape_cast %5 : vector<1x16x16x27xbf16> to vector<16x16x27xbf16>
    %7 = vector.shape_cast %6 : vector<16x16x27xbf16> to vector<256x27xbf16>
    %c0_9 = arith.constant 0 : index
    %c0_10 = arith.constant 0 : index
    %8 = vector.load %arg3[%c0_9, %c0_10] : memref<27x64xbf16, #tpu.memory_space<vmem>>, vector<27x64xbf16>
    %cst_11 = arith.constant dense<0.000000e+00> : vector<256x64xf32>
    %9 = tpu.matmul %7, %8, %cst_11 {dimension_numbers = #tpu.dot_dimension_numbers<[1], [0], [0], [1], [0, 0, 1, 1], [], []>} : vector<256x27xbf16>, vector<27x64xbf16>, vector<256x64xf32> -> vector<256x64xf32>
    %10 = arith.addf %4, %9 : vector<256x64xf32>
    %cst_12 = arith.constant 0.000000e+00 : f32
    %11 = vector.broadcast %cst_12 : f32 to vector<256x64xf32>
    %12 = arith.maximumf %10, %11 : vector<256x64xf32>
    %13 = vector.shape_cast %12 : vector<256x64xf32> to vector<16x16x64xf32>
    %14 = arith.truncf %13 : vector<16x16x64xf32> to vector<16x16x64xbf16>
    %c0_13 = arith.constant 0 : index
    %c1 = arith.constant 1 : index
    %c1_14 = arith.constant 1 : index
    %c0_15 = arith.constant 0 : index
    %15 = vector.load %arg5[%c0_13, %c1, %c1_14, %c0_15] : memref<1x18x18x64xbf16, #tpu.memory_space<vmem>>, vector<1x16x16x64xbf16>
    %16 = vector.shape_cast %15 : vector<1x16x16x64xbf16> to vector<16x16x64xbf16>
    %17 = vector.shape_cast %14 : vector<16x16x64xbf16> to vector<1x16x16x64xbf16>
    tpu.vector_store %arg5[%c0_13, %c1, %c1_14, %c0_15], %17 {strides = array<i32>} : memref<1x18x18x64xbf16, #tpu.memory_space<vmem>>, vector<1x16x16x64xbf16>,
    return
  }
  func.func @transform_0(%arg0: i32, %arg1: i32) -> (i32, i32, i32, i32) {
    %c0_i32 = arith.constant 0 : i32
    %c0_i32_0 = arith.constant 0 : i32
    %c0_i32_1 = arith.constant 0 : i32
    %c0_i32_2 = arith.constant 0 : i32
    return %arg0, %c0_i32, %c0_i32_0, %c0_i32_1 : i32, i32, i32, i32
  }
  func.func @transform_1(%arg0: i32, %arg1: i32) -> (i32, i32) {
    %c0_i32 = arith.constant 0 : i32
    %c0_i32_0 = arith.constant 0 : i32
    return %c0_i32, %arg1 : i32, i32
  }
  func.func @transform_2(%arg0: i32, %arg1: i32) -> (i32, i32) {
    %c0_i32 = arith.constant 0 : i32
    %c0_i32_0 = arith.constant 0 : i32
    return %c0_i32, %arg1 : i32, i32
  }
  func.func @transform_3(%arg0: i32, %arg1: i32) -> (i32, i32, i32, i32) {
    %c0_i32 = arith.constant 0 : i32
    %c0_i32_0 = arith.constant 0 : i32
    %c0_i32_1 = arith.constant 0 : i32
    return %arg0, %c0_i32, %c0_i32_0, %arg1 : i32, i32, i32, i32
  }
}

</mosaic_0001>

<llo_original>
// kernel: tpu_custom_call.1
$region0: #{tpu_custom_call.1}
  #allocation0 [shape = 'u32[]', space=smem, size = 0x4, offset = 0x4, fixed_abs, tag = 'smem constant byte address 0x4 - core index']
  #allocation1 [shape = 'u32[144,128]{1,0:T(1,128)}', space=vmem, size = 0x12000, scoped, tag = 'internal scratch']
  %s0 = inlined_call_operand.hbm [shape: bf16[2,16,16,27], index: 0, kind: input, shape index: {}]
  %s1 = inlined_call_operand.hbm [shape: bf16[27,64], index: 1, kind: input, shape index: {}]
  %s2 = inlined_call_operand.vmem [shape: f32[1,64], index: 2, kind: input, shape index: {}]
  %s3 = inlined_call_operand.vmem [shape: bf16[2,18,18,64], index: 3, kind: output, shape index: {}]
  %s4 = sld [smem:[#allocation0]]
  $region53: #{tpu_custom_call.1} parent=0
    _
  %s6 = ssub.s32 1, %s4
  %s7 = scalar_select 0, %s6, %s4
  $region1: #{tpu_custom_call.1} parent=0
    #allocation2 [shape = 'u8[131072]{0}', space=vmem, size = 0x20000, scoped, tag = 'input window, operand 0']
    #allocation3 [shape = 's32[2]{0}', space=sflag, size = 0x8, scoped, tag = 'scoped memory for tpu_custom_call.1']
    #allocation4 [shape = 'u8[8192]{0}', space=vmem, size = 0x2000, scoped, tag = 'input window, operand 1, single buffered']
    #allocation5 [shape = 's32[1]{0}', space=sflag, size = 0x4, scoped, tag = 'scoped memory for tpu_custom_call.1']
    %8 = vsyncpa [#allocation3], 0
    %s9 = scalar_lea.sflag [#allocation3], 1
    %10 = vsyncpa %s9, 0
    %11 = vsyncpa [#allocation5], 0
    loop: start=0, step=1, limit=4
    $region2: #{tpu_custom_call.1} parent=1 // loop_pre_header
      _
    $region3: #{tpu_custom_call.1} parent=1 // loop_header
      %s13 = sphi 0, %s17
      %p14 = scmp.ge.s32.totalorder %s13, 4
      %s20 = sphi 0, %s32
      %s21 = sphi 0, %s28
      %s22 = sphi 0, %s20
      %s23 = sphi 0, %s21
      %s24 = sphi 0, %s22
      %s25 = sphi 0, %s23
      %s35 = sphi 0, %s37
      %s38 = sphi 0, %s35
      %s39 = sphi 0, %s38
      %s55 = sphi 0, %s39
      %s61 = sphi 0, %s63
      %s64 = sphi 0, %s61
      %s65 = sphi 0, %s64
      %s81 = sphi 0, %s65
      %s87 = sphi 0, %s89
      %s90 = sphi 0, %s87
      %s91 = sphi 0, %s90
      %s107 = sphi 0, %s91
      %s115 = sphi 0, %s117
      %s118 = sphi 0, %s115
      %s119 = sphi 0, %s118
      %s135 = sphi 0, %s119
    $region4: #{tpu_custom_call.1} parent=1 // loop_header_branch
      %16 = sbr.rel (%p14) target = $region8
    $region5: #{tpu_custom_call.1} parent=1 // loop_body
      %s18 = ssub.s32 %s13, 1
      %s19 = ssub.s32 %s13, 2
      %s26 = sadd.s32 1, %s21
      %p27 = scmp.ge.s32.totalorder %s26, 1
      %s28 = scalar_select %p27, 0, %s26
      %s29 = sadd.s32 1, %s20
      %s30 = scalar_select %p27, %s29, %s20
      %p31 = scmp.ge.s32.totalorder %s30, 2
      %s32 = scalar_select %p31, 0, %s30
      %s33 = ssub.s32 %s20, %s32
      %p34 = scmp.eq.s32.totalorder %s33, 0
      %s36 = sadd.s32 %s35, 1
      %s37 = scalar_select %p34, %s35, %s36
      %p40 = pneg %p34
      %p41 = scmp.eq.s32.totalorder %s13, 1
      %p42 = por %p40, %p41
      %p43 = scmp.ne.s32.totalorder %s35, %s38
      %p44 = scmp.eq.s32.totalorder %s13, 0
      %p45 = por %p43, %p44
      %p46 = scmp.ne.s32.totalorder %s35, %s38
      %p47 = scmp.eq.s32.totalorder %s18, 1
      %p48 = por %p46, %p47
      %p49 = scmp.ne.s32.totalorder %s38, %s39
      %p50 = scmp.eq.s32.totalorder %s18, 0
      %p51 = por %p49, %p50
      %p52 = scmp.ne.s32.totalorder %s38, %s39
      %p53 = scmp.eq.s32.totalorder %s19, 1
      %p54 = por %p52, %p53
      %p56 = scmp.ne.s32.totalorder %s39, %s55
      %p57 = scmp.eq.s32.totalorder %s19, 0
      %p58 = por %p56, %p57
      %s59 = ssub.s32 %s21, %s28
      %p60 = scmp.eq.s32.totalorder %s59, 0
      %s62 = sadd.s32 %s61, 1
      %s63 = scalar_select %p60, %s61, %s62
      %p66 = pneg %p60
      %p67 = scmp.eq.s32.totalorder %s13, 1
      %p68 = por %p66, %p67
      %p69 = scmp.ne.s32.totalorder %s61, %s64
      %p70 = scmp.eq.s32.totalorder %s13, 0
      %p71 = por %p69, %p70
      %p72 = scmp.ne.s32.totalorder %s61, %s64
      %p73 = scmp.eq.s32.totalorder %s18, 1
      %p74 = por %p72, %p73
      %p75 = scmp.ne.s32.totalorder %s64, %s65
      %p76 = scmp.eq.s32.totalorder %s18, 0
      %p77 = por %p75, %p76
      %p78 = scmp.ne.s32.totalorder %s64, %s65
      %p79 = scmp.eq.s32.totalorder %s19, 1
      %p80 = por %p78, %p79
      %p82 = scmp.ne.s32.totalorder %s65, %s81
      %p83 = scmp.eq.s32.totalorder %s19, 0
      %p84 = por %p82, %p83
      %s85 = ssub.s32 %s21, %s28
      %p86 = scmp.eq.s32.totalorder %s85, 0
      %s88 = sadd.s32 %s87, 1
      %s89 = scalar_select %p86, %s87, %s88
      %p92 = pneg %p86
      %p93 = scmp.eq.s32.totalorder %s13, 1
      %p94 = por %p92, %p93
      %p95 = scmp.ne.s32.totalorder %s87, %s90
      %p96 = scmp.eq.s32.totalorder %s13, 0
      %p97 = por %p95, %p96
      %p98 = scmp.ne.s32.totalorder %s87, %s90
      %p99 = scmp.eq.s32.totalorder %s18, 1
      %p100 = por %p98, %p99
      %p101 = scmp.ne.s32.totalorder %s90, %s91
      %p102 = scmp.eq.s32.totalorder %s18, 0
      %p103 = por %p101, %p102
      %p104 = scmp.ne.s32.totalorder %s90, %s91
      %p105 = scmp.eq.s32.totalorder %s19, 1
      %p106 = por %p104, %p105
      %p108 = scmp.ne.s32.totalorder %s91, %s107
      %p109 = scmp.eq.s32.totalorder %s19, 0
      %p110 = por %p108, %p109
      %s111 = ssub.s32 %s20, %s32
      %s112 = ssub.s32 %s21, %s28
      %s113 = sor.u32 %s111, %s112
      %p114 = scmp.eq.s32.totalorder %s113, 0
      %s116 = sadd.s32 %s115, 1
      %s117 = scalar_select %p114, %s115, %s116
      %p120 = pneg %p114
      %p121 = scmp.eq.s32.totalorder %s13, 1
      %p122 = por %p120, %p121
      %p123 = scmp.ne.s32.totalorder %s115, %s118
      %p124 = scmp.eq.s32.totalorder %s13, 0
      %p125 = por %p123, %p124
      %p126 = scmp.ne.s32.totalorder %s115, %s118
      %p127 = scmp.eq.s32.totalorder %s18, 1
      %p128 = por %p126, %p127
      %p129 = scmp.ne.s32.totalorder %s118, %s119
      %p130 = scmp.eq.s32.totalorder %s18, 0
      %p131 = por %p129, %p130
      %p132 = scmp.ne.s32.totalorder %s118, %s119
      %p133 = scmp.eq.s32.totalorder %s19, 1
      %p134 = por %p132, %p133
      %p136 = scmp.ne.s32.totalorder %s119, %s135
      %p137 = scmp.eq.s32.totalorder %s19, 0
      %p138 = por %p136, %p137
      %p139 = scmp.le.s32.totalorder 1, %s13
      %p140 = scmp.lt.s32.totalorder %s13, 3
      %p141 = pnand %p139, %p140
      %p142 = pneg %p141
      // Predicated region
      $region9: #{tpu_custom_call.1} parent=5 // pred_check
        _
      $region10: #{tpu_custom_call.1} parent=5 // pred_check_branch
        %144 = sbr.rel (%p141) target = $region12
      $region11: #{tpu_custom_call.1} parent=5 // pred_region
        %s145 = ssub.s32 %s13, 1
        // Predicated region
        $region13: #{tpu_custom_call.1} parent=11 // pred_check
          %p146 = pneg %p77
        $region14: #{tpu_custom_call.1} parent=11 // pred_check_branch
          %148 = sbr.rel (%p146) target = $region16
        $region15: #{tpu_custom_call.1} parent=11 // pred_region
          %s150 = ssub.s32 256, 256
          %151 = vsyncadd [#allocation5], %s150
          %s152 = smul.addr %s23, 64
          %s153 = scalar_lea.hbm %s1, %s152
          %s154 = sshll.u32 [#allocation4], 4
          %s155 = int_to_ptr.vmem [resolvable:$true] %s154
          %160 = dma.hbm_to_vmem [thread:$0]  %s153, 256, %s155, [#allocation5], 64, 64, 4
        $region16: #{tpu_custom_call.1} parent=11 // pred_fallthru
          _
        // Predicated region
        $region17: #{tpu_custom_call.1} parent=11 // pred_check
          %p161 = pneg %p103
        $region18: #{tpu_custom_call.1} parent=11 // pred_check_branch
          %163 = sbr.rel (%p161) target = $region20
        $region19: #{tpu_custom_call.1} parent=11 // pred_region
          %p164 = scmp.lt.s32.totalorder %s23, 0
          %s165 = scalar_select %p164, %s23, 0
          %s166 = scalar_lea.vmem %s2, %s165
        $region20: #{tpu_custom_call.1} parent=11 // pred_fallthru
          _
      $region12: #{tpu_custom_call.1} parent=5 // pred_fallthru
        _
      %p167 = scmp.lt.s32.totalorder %s13, 2
      // Predicated region
      $region21: #{tpu_custom_call.1} parent=5 // pred_check
        %p168 = pneg %p167
      $region22: #{tpu_custom_call.1} parent=5 // pred_check_branch
        %170 = sbr.rel (%p168) target = $region24
      $region23: #{tpu_custom_call.1} parent=5 // pred_region
        // Predicated region
        $region25: #{tpu_custom_call.1} parent=23 // pred_check
          %p171 = pneg %p45
        $region26: #{tpu_custom_call.1} parent=23 // pred_check_branch
          %173 = sbr.rel (%p171) target = $region28
        $region27: #{tpu_custom_call.1} parent=23 // pred_region
          %s174 = sand.u32 %s35, 1
          %s175 = scalar_lea.sflag [#allocation3], %s174
          %s176 = sand.u32 %s35, 1
          %s177 = smul.addr %s176, 128
          %s178 = scalar_lea.vmem [#allocation2], %s177
          %s180 = ssub.s32 2048, 2048
          %181 = vsyncadd %s175, %s180
          %s182 = smul.addr %s20, 32
          %s183 = smul.addr %s182, 64
          %s184 = scalar_lea.hbm %s0, %s183
          %s185 = sshll.u32 %s178, 4
          %s186 = int_to_ptr.vmem [resolvable:$true] %s185
          %191 = dma.hbm_to_vmem [thread:$0]  %s184, 2048, %s186, %s175, 64, 64, 4
        $region28: #{tpu_custom_call.1} parent=23 // pred_fallthru
          _
      $region24: #{tpu_custom_call.1} parent=5 // pred_fallthru
        _
      %p192 = scmp.le.s32.totalorder 1, %s13
      %p193 = scmp.lt.s32.totalorder %s13, 3
      %p194 = pnand %p192, %p193
      %p195 = pneg %p194
      // Predicated region
      $region29: #{tpu_custom_call.1} parent=5 // pred_check
        _
      $region30: #{tpu_custom_call.1} parent=5 // pred_check_branch
        %197 = sbr.rel (%p194) target = $region32
      $region31: #{tpu_custom_call.1} parent=5 // pred_region
        %s198 = ssub.s32 %s13, 1
        %s199 = sand.u32 %s38, 1
        %s200 = scalar_lea.sflag [#allocation3], %s199
        %s201 = sand.u32 %s38, 1
        %s202 = smul.addr %s201, 128
        %s203 = scalar_lea.vmem [#allocation2], %s202
        // Predicated region
        $region33: #{tpu_custom_call.1} parent=31 // pred_check
          %p204 = pneg %p51
        $region34: #{tpu_custom_call.1} parent=31 // pred_check_branch
          %206 = sbr.rel (%p204) target = $region36
        $region35: #{tpu_custom_call.1} parent=31 // pred_region
          %207 = dma.done %s200, 2048
        $region36: #{tpu_custom_call.1} parent=31 // pred_fallthru
          _
        // Predicated region
        $region37: #{tpu_custom_call.1} parent=31 // pred_check
          %p208 = pneg %p77
        $region38: #{tpu_custom_call.1} parent=31 // pred_check_branch
          %210 = sbr.rel (%p208) target = $region40
        $region39: #{tpu_custom_call.1} parent=31 // pred_region
          %211 = dma.done [#allocation5], 256
        $region40: #{tpu_custom_call.1} parent=31 // pred_fallthru
          _
        %s212 = sand.u32 %s38, 1
        %s213 = scalar_lea.sflag [#allocation3], %s212
        %s214 = sand.u32 %s38, 1
        %s215 = smul.addr %s214, 128
        %s216 = scalar_lea.vmem [#allocation2], %s215
        %p217 = pneg %p51
        %p218 = pneg %p48
        %p219 = pneg %p77
        %p220 = pneg %p74
        %p221 = scmp.lt.s32.totalorder %s23, 0
        %s222 = scalar_select %p221, %s23, 0
        %s223 = scalar_lea.vmem %s2, %s222
        %p224 = pneg %p103
        %p225 = pneg %p100
        %p226 = pneg %p131
        %p227 = pneg %p128
        %p228 = scmp.lt.s32.totalorder %s22, 1
        %s229 = scalar_select %p228, %s22, 1
        %p230 = scmp.lt.s32.totalorder %s23, 0
        %s231 = scalar_select %p230, %s23, 0
        %s232 = smul.addr %s229, 54
        %s233 = sadd.s32 %s231, %s232
        %s234 = smul.addr %s233, 4
        %s235 = scalar_lea.vmem %s3, %s234
        %p236 = scmp.lt.s32.totalorder %s23, 0
        %s237 = scalar_select %p236, %s23, 0
        %s238 = scalar_lea.vmem %s2, %s237
        %p239 = scmp.lt.s32.totalorder %s22, 1
        %s240 = scalar_select %p239, %s22, 1
        %p241 = scmp.lt.s32.totalorder %s23, 0
        %s242 = scalar_select %p241, %s23, 0
        %s243 = smul.addr %s240, 54
        %s244 = sadd.s32 %s242, %s243
        %s245 = smul.addr %s244, 4
        %s246 = scalar_lea.vmem %s3, %s245
        %vm248 = vcmask 519168
        %249 = vst.msk [vmem:[%s246] sm:$0xf] %vm248, 0
        %250 = vst.msk [vmem:[%s246 + $0x4] sm:$0xf] %vm248, 0
        %vm251 = vcmask 516096
        %252 = vst.msk [vmem:[%s246 + $0x8] sm:$0x1] %vm251, 0
        %253 = vst.msk [vmem:[%s246 + $0xc] sm:$0xf] %vm248, 0
        %254 = vst.msk [vmem:[%s246 + $0x10] sm:$0xf] %vm248, 0
        %255 = vst.msk [vmem:[%s246 + $0x14] sm:$0x1] %vm251, 0
        %256 = vst.msk [vmem:[%s246 + $0x18] sm:$0xf] %vm248, 0
        %257 = vst.msk [vmem:[%s246 + $0x1c] sm:$0xf] %vm248, 0
        %258 = vst.msk [vmem:[%s246 + $0x20] sm:$0x1] %vm251, 0
        %259 = vst.msk [vmem:[%s246 + $0x24] sm:$0xf] %vm248, 0
        %260 = vst.msk [vmem:[%s246 + $0x28] sm:$0xf] %vm248, 0
        %261 = vst.msk [vmem:[%s246 + $0x2c] sm:$0x1] %vm251, 0
        %262 = vst.msk [vmem:[%s246 + $0x30] sm:$0xf] %vm248, 0
        %263 = vst.msk [vmem:[%s246 + $0x34] sm:$0xf] %vm248, 0
        %264 = vst.msk [vmem:[%s246 + $0x38] sm:$0x1] %vm251, 0
        %265 = vst.msk [vmem:[%s246 + $0x3c] sm:$0xf] %vm248, 0
        %266 = vst.msk [vmem:[%s246 + $0x40] sm:$0xf] %vm248, 0
        %267 = vst.msk [vmem:[%s246 + $0x44] sm:$0x1] %vm251, 0
        %268 = vst.msk [vmem:[%s246 + $0x48] sm:$0xf] %vm248, 0
        %269 = vst.msk [vmem:[%s246 + $0x4c] sm:$0xf] %vm248, 0
        %270 = vst.msk [vmem:[%s246 + $0x50] sm:$0x1] %vm251, 0
        %271 = vst.msk [vmem:[%s246 + $0x54] sm:$0xf] %vm248, 0
        %272 = vst.msk [vmem:[%s246 + $0x58] sm:$0xf] %vm248, 0
        %273 = vst.msk [vmem:[%s246 + $0x5c] sm:$0x1] %vm251, 0
        %274 = vst.msk [vmem:[%s246 + $0x60] sm:$0xf] %vm248, 0
        %275 = vst.msk [vmem:[%s246 + $0x64] sm:$0xf] %vm248, 0
        %276 = vst.msk [vmem:[%s246 + $0x68] sm:$0x1] %vm251, 0
        %277 = vst.msk [vmem:[%s246 + $0x6c] sm:$0xf] %vm248, 0
        %278 = vst.msk [vmem:[%s246 + $0x70] sm:$0xf] %vm248, 0
        %279 = vst.msk [vmem:[%s246 + $0x74] sm:$0x1] %vm251, 0
        %280 = vst.msk [vmem:[%s246 + $0x78] sm:$0xf] %vm248, 0
        %281 = vst.msk [vmem:[%s246 + $0x7c] sm:$0xf] %vm248, 0
        %282 = vst.msk [vmem:[%s246 + $0x80] sm:$0x1] %vm251, 0
        %283 = vst.msk [vmem:[%s246 + $0x84] sm:$0xf] %vm248, 0
        %284 = vst.msk [vmem:[%s246 + $0x88] sm:$0xf] %vm248, 0
        %285 = vst.msk [vmem:[%s246 + $0x8c] sm:$0x1] %vm251, 0
        %286 = vst.msk [vmem:[%s246 + $0x90] sm:$0xf] %vm248, 0
        %287 = vst.msk [vmem:[%s246 + $0x94] sm:$0xf] %vm248, 0
        %288 = vst.msk [vmem:[%s246 + $0x98] sm:$0x1] %vm251, 0
        %289 = vst.msk [vmem:[%s246 + $0x9c] sm:$0xf] %vm248, 0
        %290 = vst.msk [vmem:[%s246 + $0xa0] sm:$0xf] %vm248, 0
        %291 = vst.msk [vmem:[%s246 + $0xa4] sm:$0x1] %vm251, 0
        %292 = vst.msk [vmem:[%s246 + $0xa8] sm:$0xf] %vm248, 0
        %293 = vst.msk [vmem:[%s246 + $0xac] sm:$0xf] %vm248, 0
        %294 = vst.msk [vmem:[%s246 + $0xb0] sm:$0x1] %vm251, 0
        %295 = vst.msk [vmem:[%s246 + $0xb4] sm:$0xf] %vm248, 0
        %296 = vst.msk [vmem:[%s246 + $0xb8] sm:$0xf] %vm248, 0
        %297 = vst.msk [vmem:[%s246 + $0xbc] sm:$0x1] %vm251, 0
        %298 = vst.msk [vmem:[%s246 + $0xc0] sm:$0xf] %vm248, 0
        %299 = vst.msk [vmem:[%s246 + $0xc4] sm:$0xf] %vm248, 0
        %300 = vst.msk [vmem:[%s246 + $0xc8] sm:$0x1] %vm251, 0
        %301 = vst.msk [vmem:[%s246 + $0xcc] sm:$0xf] %vm248, 0
        %302 = vst.msk [vmem:[%s246 + $0xd0] sm:$0xf] %vm248, 0
        %303 = vst.msk [vmem:[%s246 + $0xd4] sm:$0x1] %vm251, 0
        %v304 = vld [vmem:[%s238] sm:$0x1]
        %v306 = vlaneseq
        %v307 = vshrl.u32 %v306, 7
        %v308 = vsub.s32 0, %v307
        %v309 = vrot.slane %v304, %v308
        %v311 = vld [vmem:[%s203] sm:$0xf]
        %v312 = vld [vmem:[%s203 + $0x4] sm:$0xf]
        %v313 = vld [vmem:[%s203 + $0x8] sm:$0xf]
        %v314 = vld [vmem:[%s203 + $0xc] sm:$0xf]
        %v315 = vld [vmem:[%s203 + $0x10] sm:$0xf]
        %v316 = vld [vmem:[%s203 + $0x14] sm:$0xf]
        %v317 = vld [vmem:[%s203 + $0x18] sm:$0xf]
        %v318 = vld [vmem:[%s203 + $0x1c] sm:$0xf]
        %v319 = vld [vmem:[%s203 + $0x20] sm:$0xf]
        %v320 = vld [vmem:[%s203 + $0x24] sm:$0xf]
        %v321 = vld [vmem:[%s203 + $0x28] sm:$0xf]
        %v322 = vld [vmem:[%s203 + $0x2c] sm:$0xf]
        %v323 = vld [vmem:[%s203 + $0x30] sm:$0xf]
        %v324 = vld [vmem:[%s203 + $0x34] sm:$0xf]
        %v325 = vld [vmem:[%s203 + $0x38] sm:$0xf]
        %v326 = vld [vmem:[%s203 + $0x3c] sm:$0xf]
        %v327 = vld [vmem:[%s203 + $0x40] sm:$0xf]
        %v328 = vld [vmem:[%s203 + $0x44] sm:$0xf]
        %v329 = vld [vmem:[%s203 + $0x48] sm:$0xf]
        %v330 = vld [vmem:[%s203 + $0x4c] sm:$0xf]
        %v331 = vld [vmem:[%s203 + $0x50] sm:$0xf]
        %v332 = vld [vmem:[%s203 + $0x54] sm:$0xf]
        %v333 = vld [vmem:[%s203 + $0x58] sm:$0xf]
        %v334 = vld [vmem:[%s203 + $0x5c] sm:$0xf]
        %v335 = vld [vmem:[%s203 + $0x60] sm:$0xf]
        %v336 = vld [vmem:[%s203 + $0x64] sm:$0xf]
        %v337 = vld [vmem:[%s203 + $0x68] sm:$0xf]
        %v338 = vld [vmem:[%s203 + $0x6c] sm:$0xf]
        %v339 = vld [vmem:[%s203 + $0x70] sm:$0xf]
        %v340 = vld [vmem:[%s203 + $0x74] sm:$0xf]
        %v341 = vld [vmem:[%s203 + $0x78] sm:$0xf]
        %v342 = vld [vmem:[%s203 + $0x7c] sm:$0xf]
        %v343 = vld [vmem:[#allocation4] sm:$0xf]
        %v344 = vld [vmem:[#allocation4 + $0x4] sm:$0xf]
        %v345 = vld [vmem:[#allocation4 + $0x8] sm:$0xf]
        %v346 = vld [vmem:[#allocation4 + $0xc] sm:$0x3]
        %v379 = vunpack.c.l.b16 %v311
        %v380 = vunpack.c.l.b16 %v312
        %v381 = vunpack.c.l.b16 %v313
        %v382 = vunpack.c.l.b16 %v314
        %v383 = vunpack.c.l.b16 %v315
        %v384 = vunpack.c.l.b16 %v316
        %v385 = vunpack.c.l.b16 %v317
        %v386 = vunpack.c.l.b16 %v318
        %v387 = vunpack.c.l.b16 %v319
        %v388 = vunpack.c.l.b16 %v320
        %v389 = vunpack.c.l.b16 %v321
        %v390 = vunpack.c.l.b16 %v322
        %v391 = vunpack.c.l.b16 %v323
        %v392 = vunpack.c.l.b16 %v324
        %v393 = vunpack.c.l.b16 %v325
        %v394 = vunpack.c.l.b16 %v326
        %v395 = vunpack.c.l.b16 %v327
        %v396 = vunpack.c.l.b16 %v328
        %v397 = vunpack.c.l.b16 %v329
        %v398 = vunpack.c.l.b16 %v330
        %v399 = vunpack.c.l.b16 %v331
        %v400 = vunpack.c.l.b16 %v332
        %v401 = vunpack.c.l.b16 %v333
        %v402 = vunpack.c.l.b16 %v334
        %v403 = vunpack.c.l.b16 %v335
        %v404 = vunpack.c.l.b16 %v336
        %v405 = vunpack.c.l.b16 %v337
        %v406 = vunpack.c.l.b16 %v338
        %v407 = vunpack.c.l.b16 %v339
        %v408 = vunpack.c.l.b16 %v340
        %v409 = vunpack.c.l.b16 %v341
        %v410 = vunpack.c.l.b16 %v342
        %v411 = vpack.c.b16 %v380, %v379
        %v412 = vpack.c.b16 %v382, %v381
        %v413 = vpack.c.b16 %v384, %v383
        %v414 = vpack.c.b16 %v386, %v385
        %v415 = vpack.c.b16 %v388, %v387
        %v416 = vpack.c.b16 %v390, %v389
        %v417 = vpack.c.b16 %v392, %v391
        %v418 = vpack.c.b16 %v394, %v393
        %v419 = vpack.c.b16 %v396, %v395
        %v420 = vpack.c.b16 %v398, %v397
        %v421 = vpack.c.b16 %v400, %v399
        %v422 = vpack.c.b16 %v402, %v401
        %v423 = vpack.c.b16 %v404, %v403
        %v424 = vpack.c.b16 %v406, %v405
        %v425 = vpack.c.b16 %v408, %v407
        %v426 = vpack.c.b16 %v410, %v409
        %v431 = vunpack.c.l.b16 %v343
        %v432 = vunpack.c.l.b16 %v344
        %v433 = vunpack.c.l.b16 %v345
        %v434 = vunpack.c.l.b16 %v346
        %v435 = vpack.c.b16 %v432, %v431
        %v436 = vpack.c.b16 %v434, %v433
        %vm438 = vcmask 220160
        %v440 = vsel %vm438, %v411, 0
        %v443 = vsel %vm438, %v412, 0
        %v446 = vsel %vm438, %v413, 0
        %v449 = vsel %vm438, %v414, 0
        %v452 = vsel %vm438, %v415, 0
        %v455 = vsel %vm438, %v416, 0
        %v458 = vsel %vm438, %v417, 0
        %v461 = vsel %vm438, %v418, 0
        %v464 = vsel %vm438, %v419, 0
        %v467 = vsel %vm438, %v420, 0
        %v470 = vsel %vm438, %v421, 0
        %v473 = vsel %vm438, %v422, 0
        %v476 = vsel %vm438, %v423, 0
        %v479 = vsel %vm438, %v424, 0
        %v482 = vsel %vm438, %v425, 0
        %v485 = vsel %vm438, %v426, 0
        %vm487 = vcmask 1044480
        %vm488 = vcmask 1045504
        %v489 = vsel %vm487, 4294967295, 65535
        %v490 = vsel %vm488, %v489, 0
        %v492 = vand.u32 %v436, %v490
        %494 = vmatprep.subr.bf16.mxu0 0
        %495 = vmatpush1.bf16.msra.mxu0 0
        %496 = vmatprep.subr.bf16.mxu0 0
        %497 = vmatpush1.bf16.msra.mxu0 0
        %498 = vmatprep.subr.bf16.mxu0 0
        %499 = vmatpush1.bf16.msra.mxu0 0
        %500 = vmatprep.subr.bf16.mxu0 0
        %501 = vmatpush1.bf16.msra.mxu0 0
        %502 = vmatprep.subr.bf16.mxu0 0
        %503 = vmatpush1.bf16.msra.mxu0 0
        %504 = vmatprep.subr.bf16.mxu0 0
        %505 = vmatpush1.bf16.msra.mxu0 0
        %506 = vmatprep.subr.bf16.mxu0 0
        %507 = vmatpush1.bf16.msra.mxu0 %v492
        %508 = vmatprep.subr.bf16.mxu0 0
        %509 = vmatpush1.bf16.msra.mxu0 %v435
        %510 = vmatprep.subr.bf16.mxu0 0
        %511 = vmatpush2.bf16.msra.mxu0 0
        %512 = vmatprep.subr.bf16.mxu0 0
        %513 = vmatpush2.bf16.msra.mxu0 0
        %514 = vmatprep.subr.bf16.mxu0 0
        %515 = vmatpush2.bf16.msra.mxu0 0
        %516 = vmatprep.subr.bf16.mxu0 0
        %517 = vmatpush2.bf16.msra.mxu0 0
        %518 = vmatprep.subr.bf16.mxu0 0
        %519 = vmatpush2.bf16.msra.mxu0 0
        %520 = vmatprep.subr.bf16.mxu0 0
        %521 = vmatpush2.bf16.msra.mxu0 0
        %522 = vmatprep.subr.bf16.mxu0 0
        %523 = vmatpush2.bf16.msra.mxu0 0
        %524 = vmatprep.subr.bf16.mxu0 0
        %525 = vmatpush2.bf16.msra.mxu0 0
        %526 = vmatprep.mubr.bf16.mxu0 0
        %527 = vmatmul.mubr.bf16.gmra.mxu0 %v440
        %v528 = vpop.f32.mrf.mxu0
        %v529 = vadd.f32 0.0, %v528
        %v530 = vpop.f32.mrf.mxu0
        %v531 = vpop.f32.mrf.mxu0
        %v532 = vadd.f32 0.0, %v531
        %v533 = vpop.f32.mrf.mxu0
        %534 = vmatprep.mubr.bf16.mxu0 0
        %535 = vmatmul.mubr.bf16.gmra.mxu0 %v443
        %v536 = vpop.f32.mrf.mxu0
        %v537 = vadd.f32 0.0, %v536
        %v538 = vpop.f32.mrf.mxu0
        %v539 = vpop.f32.mrf.mxu0
        %v540 = vadd.f32 0.0, %v539
        %v541 = vpop.f32.mrf.mxu0
        %542 = vmatprep.mubr.bf16.mxu0 0
        %543 = vmatmul.mubr.bf16.gmra.mxu0 %v446
        %v544 = vpop.f32.mrf.mxu0
        %v545 = vadd.f32 0.0, %v544
        %v546 = vpop.f32.mrf.mxu0
        %v547 = vpop.f32.mrf.mxu0
        %v548 = vadd.f32 0.0, %v547
        %v549 = vpop.f32.mrf.mxu0
        %550 = vmatprep.mubr.bf16.mxu0 0
        %551 = vmatmul.mubr.bf16.gmra.mxu0 %v449
        %v552 = vpop.f32.mrf.mxu0
        %v553 = vadd.f32 0.0, %v552
        %v554 = vpop.f32.mrf.mxu0
        %v555 = vpop.f32.mrf.mxu0
        %v556 = vadd.f32 0.0, %v555
        %v557 = vpop.f32.mrf.mxu0
        %558 = vmatprep.mubr.bf16.mxu0 0
        %559 = vmatmul.mubr.bf16.gmra.mxu0 %v452
        %v560 = vpop.f32.mrf.mxu0
        %v561 = vadd.f32 0.0, %v560
        %v562 = vpop.f32.mrf.mxu0
        %v563 = vpop.f32.mrf.mxu0
        %v564 = vadd.f32 0.0, %v563
        %v565 = vpop.f32.mrf.mxu0
        %566 = vmatprep.mubr.bf16.mxu0 0
        %567 = vmatmul.mubr.bf16.gmra.mxu0 %v455
        %v568 = vpop.f32.mrf.mxu0
        %v569 = vadd.f32 0.0, %v568
        %v570 = vpop.f32.mrf.mxu0
        %v571 = vpop.f32.mrf.mxu0
        %v572 = vadd.f32 0.0, %v571
        %v573 = vpop.f32.mrf.mxu0
        %574 = vmatprep.mubr.bf16.mxu0 0
        %575 = vmatmul.mubr.bf16.gmra.mxu0 %v458
        %v576 = vpop.f32.mrf.mxu0
        %v577 = vadd.f32 0.0, %v576
        %v578 = vpop.f32.mrf.mxu0
        %v579 = vpop.f32.mrf.mxu0
        %v580 = vadd.f32 0.0, %v579
        %v581 = vpop.f32.mrf.mxu0
        %582 = vmatprep.mubr.bf16.mxu0 0
        %583 = vmatmul.mubr.bf16.gmra.mxu0 %v461
        %v584 = vpop.f32.mrf.mxu0
        %v585 = vadd.f32 0.0, %v584
        %v586 = vpop.f32.mrf.mxu0
        %v587 = vpop.f32.mrf.mxu0
        %v588 = vadd.f32 0.0, %v587
        %v589 = vpop.f32.mrf.mxu0
        %590 = vmatprep.mubr.bf16.mxu0 0
        %591 = vmatmul.mubr.bf16.gmra.mxu0 %v464
        %v592 = vpop.f32.mrf.mxu0
        %v593 = vadd.f32 0.0, %v592
        %v594 = vpop.f32.mrf.mxu0
        %v595 = vpop.f32.mrf.mxu0
        %v596 = vadd.f32 0.0, %v595
        %v597 = vpop.f32.mrf.mxu0
        %598 = vmatprep.mubr.bf16.mxu0 0
        %599 = vmatmul.mubr.bf16.gmra.mxu0 %v467
        %v600 = vpop.f32.mrf.mxu0
        %v601 = vadd.f32 0.0, %v600
        %v602 = vpop.f32.mrf.mxu0
        %v603 = vpop.f32.mrf.mxu0
        %v604 = vadd.f32 0.0, %v603
        %v605 = vpop.f32.mrf.mxu0
        %606 = vmatprep.mubr.bf16.mxu0 0
        %607 = vmatmul.mubr.bf16.gmra.mxu0 %v470
        %v608 = vpop.f32.mrf.mxu0
        %v609 = vadd.f32 0.0, %v608
        %v610 = vpop.f32.mrf.mxu0
        %v611 = vpop.f32.mrf.mxu0
        %v612 = vadd.f32 0.0, %v611
        %v613 = vpop.f32.mrf.mxu0
        %614 = vmatprep.mubr.bf16.mxu0 0
        %615 = vmatmul.mubr.bf16.gmra.mxu0 %v473
        %v616 = vpop.f32.mrf.mxu0
        %v617 = vadd.f32 0.0, %v616
        %v618 = vpop.f32.mrf.mxu0
        %v619 = vpop.f32.mrf.mxu0
        %v620 = vadd.f32 0.0, %v619
        %v621 = vpop.f32.mrf.mxu0
        %622 = vmatprep.mubr.bf16.mxu0 0
        %623 = vmatmul.mubr.bf16.gmra.mxu0 %v476
        %v624 = vpop.f32.mrf.mxu0
        %v625 = vadd.f32 0.0, %v624
        %v626 = vpop.f32.mrf.mxu0
        %v627 = vpop.f32.mrf.mxu0
        %v628 = vadd.f32 0.0, %v627
        %v629 = vpop.f32.mrf.mxu0
        %630 = vmatprep.mubr.bf16.mxu0 0
        %631 = vmatmul.mubr.bf16.gmra.mxu0 %v479
        %v632 = vpop.f32.mrf.mxu0
        %v633 = vadd.f32 0.0, %v632
        %v634 = vpop.f32.mrf.mxu0
        %v635 = vpop.f32.mrf.mxu0
        %v636 = vadd.f32 0.0, %v635
        %v637 = vpop.f32.mrf.mxu0
        %638 = vmatprep.mubr.bf16.mxu0 0
        %639 = vmatmul.mubr.bf16.gmra.mxu0 %v482
        %v640 = vpop.f32.mrf.mxu0
        %v641 = vadd.f32 0.0, %v640
        %v642 = vpop.f32.mrf.mxu0
        %v643 = vpop.f32.mrf.mxu0
        %v644 = vadd.f32 0.0, %v643
        %v645 = vpop.f32.mrf.mxu0
        %646 = vmatprep.mubr.bf16.mxu0 0
        %647 = vmatmul.mubr.bf16.gmra.mxu0 %v485
        %v648 = vpop.f32.mrf.mxu0
        %v649 = vadd.f32 0.0, %v648
        %v650 = vpop.f32.mrf.mxu0
        %v651 = vpop.f32.mrf.mxu0
        %v652 = vadd.f32 0.0, %v651
        %v653 = vpop.f32.mrf.mxu0
        %654 = vdwg.mxu0
        %v655 = vadd.f32 %v309, %v529
        %v656 = vadd.f32 %v309, %v532
        %v657 = vadd.f32 %v309, %v537
        %v658 = vadd.f32 %v309, %v540
        %v659 = vadd.f32 %v309, %v545
        %v660 = vadd.f32 %v309, %v548
        %v661 = vadd.f32 %v309, %v553
        %v662 = vadd.f32 %v309, %v556
        %v663 = vadd.f32 %v309, %v561
        %v664 = vadd.f32 %v309, %v564
        %v665 = vadd.f32 %v309, %v569
        %v666 = vadd.f32 %v309, %v572
        %v667 = vadd.f32 %v309, %v577
        %v668 = vadd.f32 %v309, %v580
        %v669 = vadd.f32 %v309, %v585
        %v670 = vadd.f32 %v309, %v588
        %v671 = vadd.f32 %v309, %v593
        %v672 = vadd.f32 %v309, %v596
        %v673 = vadd.f32 %v309, %v601
        %v674 = vadd.f32 %v309, %v604
        %v675 = vadd.f32 %v309, %v609
        %v676 = vadd.f32 %v309, %v612
        %v677 = vadd.f32 %v309, %v617
        %v678 = vadd.f32 %v309, %v620
        %v679 = vadd.f32 %v309, %v625
        %v680 = vadd.f32 %v309, %v628
        %v681 = vadd.f32 %v309, %v633
        %v682 = vadd.f32 %v309, %v636
        %v683 = vadd.f32 %v309, %v641
        %v684 = vadd.f32 %v309, %v644
        %v685 = vadd.f32 %v309, %v649
        %v686 = vadd.f32 %v309, %v652
        %v687 = vmax.f32 %v655, 0.0
        %v688 = vmax.f32 %v656, 0.0
        %v689 = vmax.f32 %v657, 0.0
        %v690 = vmax.f32 %v658, 0.0
        %v691 = vmax.f32 %v659, 0.0
        %v692 = vmax.f32 %v660, 0.0
        %v693 = vmax.f32 %v661, 0.0
        %v694 = vmax.f32 %v662, 0.0
        %v695 = vmax.f32 %v663, 0.0
        %v696 = vmax.f32 %v664, 0.0
        %v697 = vmax.f32 %v665, 0.0
        %v698 = vmax.f32 %v666, 0.0
        %v699 = vmax.f32 %v667, 0.0
        %v700 = vmax.f32 %v668, 0.0
        %v701 = vmax.f32 %v669, 0.0
        %v702 = vmax.f32 %v670, 0.0
        %v703 = vmax.f32 %v671, 0.0
        %v704 = vmax.f32 %v672, 0.0
        %v705 = vmax.f32 %v673, 0.0
        %v706 = vmax.f32 %v674, 0.0
        %v707 = vmax.f32 %v675, 0.0
        %v708 = vmax.f32 %v676, 0.0
        %v709 = vmax.f32 %v677, 0.0
        %v710 = vmax.f32 %v678, 0.0
        %v711 = vmax.f32 %v679, 0.0
        %v712 = vmax.f32 %v680, 0.0
        %v713 = vmax.f32 %v681, 0.0
        %v714 = vmax.f32 %v682, 0.0
        %v715 = vmax.f32 %v683, 0.0
        %v716 = vmax.f32 %v684, 0.0
        %v717 = vmax.f32 %v685, 0.0
        %v718 = vmax.f32 %v686, 0.0
        %v719 = vpack.c.bf16 %v688, %v687
        %v720 = vpack.c.bf16 %v690, %v689
        %v721 = vpack.c.bf16 %v692, %v691
        %v722 = vpack.c.bf16 %v694, %v693
        %v723 = vpack.c.bf16 %v696, %v695
        %v724 = vpack.c.bf16 %v698, %v697
        %v725 = vpack.c.bf16 %v700, %v699
        %v726 = vpack.c.bf16 %v702, %v701
        %v727 = vpack.c.bf16 %v704, %v703
        %v728 = vpack.c.bf16 %v706, %v705
        %v729 = vpack.c.bf16 %v708, %v707
        %v730 = vpack.c.bf16 %v710, %v709
        %v731 = vpack.c.bf16 %v712, %v711
        %v732 = vpack.c.bf16 %v714, %v713
        %v733 = vpack.c.bf16 %v716, %v715
        %v734 = vpack.c.bf16 %v718, %v717
        %v751 = vunpack.c.l.b16 %v719
        %v752 = vunpack.c.h.b16 %v719
        %v753 = vunpack.c.l.b16 %v720
        %v754 = vunpack.c.h.b16 %v720
        %v755 = vunpack.c.l.b16 %v721
        %v756 = vunpack.c.h.b16 %v721
        %v757 = vunpack.c.l.b16 %v722
        %v758 = vunpack.c.h.b16 %v722
        %v759 = vunpack.c.l.b16 %v723
        %v760 = vunpack.c.h.b16 %v723
        %v761 = vunpack.c.l.b16 %v724
        %v762 = vunpack.c.h.b16 %v724
        %v763 = vunpack.c.l.b16 %v725
        %v764 = vunpack.c.h.b16 %v725
        %v765 = vunpack.c.l.b16 %v726
        %v766 = vunpack.c.h.b16 %v726
        %v767 = vunpack.c.l.b16 %v727
        %v768 = vunpack.c.h.b16 %v727
        %v769 = vunpack.c.l.b16 %v728
        %v770 = vunpack.c.h.b16 %v728
        %v771 = vunpack.c.l.b16 %v729
        %v772 = vunpack.c.h.b16 %v729
        %v773 = vunpack.c.l.b16 %v730
        %v774 = vunpack.c.h.b16 %v730
        %v775 = vunpack.c.l.b16 %v731
        %v776 = vunpack.c.h.b16 %v731
        %v777 = vunpack.c.l.b16 %v732
        %v778 = vunpack.c.h.b16 %v732
        %v779 = vunpack.c.l.b16 %v733
        %v780 = vunpack.c.h.b16 %v733
        %v781 = vunpack.c.l.b16 %v734
        %v782 = vunpack.c.h.b16 %v734
        %v783 = vpack.c.b16 %v751, %v751
        %v784 = vpack.c.b16 %v752, %v752
        %v785 = vpack.c.b16 %v753, %v753
        %v786 = vpack.c.b16 %v754, %v754
        %v787 = vpack.c.b16 %v755, %v755
        %v788 = vpack.c.b16 %v756, %v756
        %v789 = vpack.c.b16 %v757, %v757
        %v790 = vpack.c.b16 %v758, %v758
        %v791 = vpack.c.b16 %v759, %v759
        %v792 = vpack.c.b16 %v760, %v760
        %v793 = vpack.c.b16 %v761, %v761
        %v794 = vpack.c.b16 %v762, %v762
        %v795 = vpack.c.b16 %v763, %v763
        %v796 = vpack.c.b16 %v764, %v764
        %v797 = vpack.c.b16 %v765, %v765
        %v798 = vpack.c.b16 %v766, %v766
        %v799 = vpack.c.b16 %v767, %v767
        %v800 = vpack.c.b16 %v768, %v768
        %v801 = vpack.c.b16 %v769, %v769
        %v802 = vpack.c.b16 %v770, %v770
        %v803 = vpack.c.b16 %v771, %v771
        %v804 = vpack.c.b16 %v772, %v772
        %v805 = vpack.c.b16 %v773, %v773
        %v806 = vpack.c.b16 %v774, %v774
        %v807 = vpack.c.b16 %v775, %v775
        %v808 = vpack.c.b16 %v776, %v776
        %v809 = vpack.c.b16 %v777, %v777
        %v810 = vpack.c.b16 %v778, %v778
        %v811 = vpack.c.b16 %v779, %v779
        %v812 = vpack.c.b16 %v780, %v780
        %v813 = vpack.c.b16 %v781, %v781
        %v814 = vpack.c.b16 %v782, %v782
        %vm815 = vsmask.f32 256
        %vm816 = vsmask.f32 4368
        %vm817 = vmor %vm815, %vm816
        %v819 = vshrl.u32 %v783, 16
        %v821 = vrot.slane %v819, 7
        %v822 = vshll.u32 %v783, 16
        %v824 = vor.u32 %v821, %v822
        %v825 = vrot.slane %v821, 4
        %v827 = vshrl.u32 %v784, 16
        %v829 = vrot.slane %v827, 7
        %v830 = vshll.u32 %v784, 16
        %v832 = vor.u32 %v829, %v830
        %v833 = vsel %vm817, %v825, %v832
        %v834 = vrot.slane %v829, 4
        %v836 = vshrl.u32 %v785, 16
        %v838 = vrot.slane %v836, 7
        %v839 = vshll.u32 %v785, 16
        %v841 = vor.u32 %v838, %v839
        %v842 = vrot.slane %v838, 4
        %v844 = vshrl.u32 %v786, 16
        %v846 = vrot.slane %v844, 7
        %v847 = vshll.u32 %v786, 16
        %v849 = vor.u32 %v846, %v847
        %v850 = vsel %vm817, %v842, %v849
        %v851 = vrot.slane %v846, 4
        %v853 = vshrl.u32 %v787, 16
        %v855 = vrot.slane %v853, 7
        %v856 = vshll.u32 %v787, 16
        %v858 = vor.u32 %v855, %v856
        %v859 = vrot.slane %v855, 4
        %v861 = vshrl.u32 %v788, 16
        %v863 = vrot.slane %v861, 7
        %v864 = vshll.u32 %v788, 16
        %v866 = vor.u32 %v863, %v864
        %v867 = vsel %vm817, %v859, %v866
        %v868 = vrot.slane %v863, 4
        %v870 = vshrl.u32 %v789, 16
        %v872 = vrot.slane %v870, 7
        %v873 = vshll.u32 %v789, 16
        %v875 = vor.u32 %v872, %v873
        %v876 = vrot.slane %v872, 4
        %v878 = vshrl.u32 %v790, 16
        %v880 = vrot.slane %v878, 7
        %v881 = vshll.u32 %v790, 16
        %v883 = vor.u32 %v880, %v881
        %v884 = vsel %vm817, %v876, %v883
        %v885 = vrot.slane %v880, 4
        %v887 = vshrl.u32 %v791, 16
        %v889 = vrot.slane %v887, 7
        %v890 = vshll.u32 %v791, 16
        %v892 = vor.u32 %v889, %v890
        %v893 = vrot.slane %v889, 4
        %v895 = vshrl.u32 %v792, 16
        %v897 = vrot.slane %v895, 7
        %v898 = vshll.u32 %v792, 16
        %v900 = vor.u32 %v897, %v898
        %v901 = vsel %vm817, %v893, %v900
        %v902 = vrot.slane %v897, 4
        %v904 = vshrl.u32 %v793, 16
        %v906 = vrot.slane %v904, 7
        %v907 = vshll.u32 %v793, 16
        %v909 = vor.u32 %v906, %v907
        %v910 = vrot.slane %v906, 4
        %v912 = vshrl.u32 %v794, 16
        %v914 = vrot.slane %v912, 7
        %v915 = vshll.u32 %v794, 16
        %v917 = vor.u32 %v914, %v915
        %v918 = vsel %vm817, %v910, %v917
        %v919 = vrot.slane %v914, 4
        %v921 = vshrl.u32 %v795, 16
        %v923 = vrot.slane %v921, 7
        %v924 = vshll.u32 %v795, 16
        %v926 = vor.u32 %v923, %v924
        %v927 = vrot.slane %v923, 4
        %v929 = vshrl.u32 %v796, 16
        %v931 = vrot.slane %v929, 7
        %v932 = vshll.u32 %v796, 16
        %v934 = vor.u32 %v931, %v932
        %v935 = vsel %vm817, %v927, %v934
        %v936 = vrot.slane %v931, 4
        %v938 = vshrl.u32 %v797, 16
        %v940 = vrot.slane %v938, 7
        %v941 = vshll.u32 %v797, 16
        %v943 = vor.u32 %v940, %v941
        %v944 = vrot.slane %v940, 4
        %v946 = vshrl.u32 %v798, 16
        %v948 = vrot.slane %v946, 7
        %v949 = vshll.u32 %v798, 16
        %v951 = vor.u32 %v948, %v949
        %v952 = vsel %vm817, %v944, %v951
        %v953 = vrot.slane %v948, 4
        %v955 = vshrl.u32 %v799, 16
        %v957 = vrot.slane %v955, 7
        %v958 = vshll.u32 %v799, 16
        %v960 = vor.u32 %v957, %v958
        %v961 = vrot.slane %v957, 4
        %v963 = vshrl.u32 %v800, 16
        %v965 = vrot.slane %v963, 7
        %v966 = vshll.u32 %v800, 16
        %v968 = vor.u32 %v965, %v966
        %v969 = vsel %vm817, %v961, %v968
        %v970 = vrot.slane %v965, 4
        %v972 = vshrl.u32 %v801, 16
        %v974 = vrot.slane %v972, 7
        %v975 = vshll.u32 %v801, 16
        %v977 = vor.u32 %v974, %v975
        %v978 = vrot.slane %v974, 4
        %v980 = vshrl.u32 %v802, 16
        %v982 = vrot.slane %v980, 7
        %v983 = vshll.u32 %v802, 16
        %v985 = vor.u32 %v982, %v983
        %v986 = vsel %vm817, %v978, %v985
        %v987 = vrot.slane %v982, 4
        %v989 = vshrl.u32 %v803, 16
        %v991 = vrot.slane %v989, 7
        %v992 = vshll.u32 %v803, 16
        %v994 = vor.u32 %v991, %v992
        %v995 = vrot.slane %v991, 4
        %v997 = vshrl.u32 %v804, 16
        %v999 = vrot.slane %v997, 7
        %v1000 = vshll.u32 %v804, 16
        %v1002 = vor.u32 %v999, %v1000
        %v1003 = vsel %vm817, %v995, %v1002
        %v1004 = vrot.slane %v999, 4
        %v1006 = vshrl.u32 %v805, 16
        %v1008 = vrot.slane %v1006, 7
        %v1009 = vshll.u32 %v805, 16
        %v1011 = vor.u32 %v1008, %v1009
        %v1012 = vrot.slane %v1008, 4
        %v1014 = vshrl.u32 %v806, 16
        %v1016 = vrot.slane %v1014, 7
        %v1017 = vshll.u32 %v806, 16
        %v1019 = vor.u32 %v1016, %v1017
        %v1020 = vsel %vm817, %v1012, %v1019
        %v1021 = vrot.slane %v1016, 4
        %v1023 = vshrl.u32 %v807, 16
        %v1025 = vrot.slane %v1023, 7
        %v1026 = vshll.u32 %v807, 16
        %v1028 = vor.u32 %v1025, %v1026
        %v1029 = vrot.slane %v1025, 4
        %v1031 = vshrl.u32 %v808, 16
        %v1033 = vrot.slane %v1031, 7
        %v1034 = vshll.u32 %v808, 16
        %v1036 = vor.u32 %v1033, %v1034
        %v1037 = vsel %vm817, %v1029, %v1036
        %v1038 = vrot.slane %v1033, 4
        %v1040 = vshrl.u32 %v809, 16
        %v1042 = vrot.slane %v1040, 7
        %v1043 = vshll.u32 %v809, 16
        %v1045 = vor.u32 %v1042, %v1043
        %v1046 = vrot.slane %v1042, 4
        %v1048 = vshrl.u32 %v810, 16
        %v1050 = vrot.slane %v1048, 7
        %v1051 = vshll.u32 %v810, 16
        %v1053 = vor.u32 %v1050, %v1051
        %v1054 = vsel %vm817, %v1046, %v1053
        %v1055 = vrot.slane %v1050, 4
        %v1057 = vshrl.u32 %v811, 16
        %v1059 = vrot.slane %v1057, 7
        %v1060 = vshll.u32 %v811, 16
        %v1062 = vor.u32 %v1059, %v1060
        %v1063 = vrot.slane %v1059, 4
        %v1065 = vshrl.u32 %v812, 16
        %v1067 = vrot.slane %v1065, 7
        %v1068 = vshll.u32 %v812, 16
        %v1070 = vor.u32 %v1067, %v1068
        %v1071 = vsel %vm817, %v1063, %v1070
        %v1072 = vrot.slane %v1067, 4
        %v1074 = vshrl.u32 %v813, 16
        %v1076 = vrot.slane %v1074, 7
        %v1077 = vshll.u32 %v813, 16
        %v1079 = vor.u32 %v1076, %v1077
        %v1080 = vrot.slane %v1076, 4
        %v1082 = vshrl.u32 %v814, 16
        %v1084 = vrot.slane %v1082, 7
        %v1085 = vshll.u32 %v814, 16
        %v1087 = vor.u32 %v1084, %v1085
        %v1088 = vsel %vm817, %v1080, %v1087
        %v1089 = vrot.slane %v1084, 4
        %s1138 = scalar_lea.vmem %s246, 12
        %vm1139 = vcmask 519168
        %vm1140 = vsmask.f32 7938
        %vm1141 = vmand %vm1139, %vm1140
        %v1142 = vld [vmem:[%s1138] sm:$0xf]
        %v1143 = vsel %vm1141, %v824, %v1142
        %1144 = vst [vmem:[%s1138] sm:$0xf] %v1143
        %1145 = vst.msk [vmem:[%s1138 + $0x4] sm:$0xf] %vm248, %v833
        %vm1146 = vcmask 516096
        %vm1147 = vmand %vm1146, %vm815
        %v1148 = vld [vmem:[%s1138 + $0x8] sm:$0x1]
        %v1149 = vsel %vm1147, %v834, %v1148
        %1150 = vst [vmem:[%s1138 + $0x8] sm:$0x1] %v1149
        %v1151 = vld [vmem:[%s1138 + $0xc] sm:$0xf]
        %v1152 = vsel %vm1141, %v841, %v1151
        %1153 = vst [vmem:[%s1138 + $0xc] sm:$0xf] %v1152
        %1154 = vst.msk [vmem:[%s1138 + $0x10] sm:$0xf] %vm248, %v850
        %v1155 = vld [vmem:[%s1138 + $0x14] sm:$0x1]
        %v1156 = vsel %vm1147, %v851, %v1155
        %1157 = vst [vmem:[%s1138 + $0x14] sm:$0x1] %v1156
        %v1158 = vld [vmem:[%s1138 + $0x18] sm:$0xf]
        %v1159 = vsel %vm1141, %v858, %v1158
        %1160 = vst [vmem:[%s1138 + $0x18] sm:$0xf] %v1159
        %1161 = vst.msk [vmem:[%s1138 + $0x1c] sm:$0xf] %vm248, %v867
        %v1162 = vld [vmem:[%s1138 + $0x20] sm:$0x1]
        %v1163 = vsel %vm1147, %v868, %v1162
        %1164 = vst [vmem:[%s1138 + $0x20] sm:$0x1] %v1163
        %v1165 = vld [vmem:[%s1138 + $0x24] sm:$0xf]
        %v1166 = vsel %vm1141, %v875, %v1165
        %1167 = vst [vmem:[%s1138 + $0x24] sm:$0xf] %v1166
        %1168 = vst.msk [vmem:[%s1138 + $0x28] sm:$0xf] %vm248, %v884
        %v1169 = vld [vmem:[%s1138 + $0x2c] sm:$0x1]
        %v1170 = vsel %vm1147, %v885, %v1169
        %1171 = vst [vmem:[%s1138 + $0x2c] sm:$0x1] %v1170
        %v1172 = vld [vmem:[%s1138 + $0x30] sm:$0xf]
        %v1173 = vsel %vm1141, %v892, %v1172
        %1174 = vst [vmem:[%s1138 + $0x30] sm:$0xf] %v1173
        %1175 = vst.msk [vmem:[%s1138 + $0x34] sm:$0xf] %vm248, %v901
        %v1176 = vld [vmem:[%s1138 + $0x38] sm:$0x1]
        %v1177 = vsel %vm1147, %v902, %v1176
        %1178 = vst [vmem:[%s1138 + $0x38] sm:$0x1] %v1177
        %v1179 = vld [vmem:[%s1138 + $0x3c] sm:$0xf]
        %v1180 = vsel %vm1141, %v909, %v1179
        %1181 = vst [vmem:[%s1138 + $0x3c] sm:$0xf] %v1180
        %1182 = vst.msk [vmem:[%s1138 + $0x40] sm:$0xf] %vm248, %v918
        %v1183 = vld [vmem:[%s1138 + $0x44] sm:$0x1]
        %v1184 = vsel %vm1147, %v919, %v1183
        %1185 = vst [vmem:[%s1138 + $0x44] sm:$0x1] %v1184
        %v1186 = vld [vmem:[%s1138 + $0x48] sm:$0xf]
        %v1187 = vsel %vm1141, %v926, %v1186
        %1188 = vst [vmem:[%s1138 + $0x48] sm:$0xf] %v1187
        %1189 = vst.msk [vmem:[%s1138 + $0x4c] sm:$0xf] %vm248, %v935
        %v1190 = vld [vmem:[%s1138 + $0x50] sm:$0x1]
        %v1191 = vsel %vm1147, %v936, %v1190
        %1192 = vst [vmem:[%s1138 + $0x50] sm:$0x1] %v1191
        %v1193 = vld [vmem:[%s1138 + $0x54] sm:$0xf]
        %v1194 = vsel %vm1141, %v943, %v1193
        %1195 = vst [vmem:[%s1138 + $0x54] sm:$0xf] %v1194
        %1196 = vst.msk [vmem:[%s1138 + $0x58] sm:$0xf] %vm248, %v952
        %v1197 = vld [vmem:[%s1138 + $0x5c] sm:$0x1]
        %v1198 = vsel %vm1147, %v953, %v1197
        %1199 = vst [vmem:[%s1138 + $0x5c] sm:$0x1] %v1198
        %v1200 = vld [vmem:[%s1138 + $0x60] sm:$0xf]
        %v1201 = vsel %vm1141, %v960, %v1200
        %1202 = vst [vmem:[%s1138 + $0x60] sm:$0xf] %v1201
        %1203 = vst.msk [vmem:[%s1138 + $0x64] sm:$0xf] %vm248, %v969
        %v1204 = vld [vmem:[%s1138 + $0x68] sm:$0x1]
        %v1205 = vsel %vm1147, %v970, %v1204
        %1206 = vst [vmem:[%s1138 + $0x68] sm:$0x1] %v1205
        %v1207 = vld [vmem:[%s1138 + $0x6c] sm:$0xf]
        %v1208 = vsel %vm1141, %v977, %v1207
        %1209 = vst [vmem:[%s1138 + $0x6c] sm:$0xf] %v1208
        %1210 = vst.msk [vmem:[%s1138 + $0x70] sm:$0xf] %vm248, %v986
        %v1211 = vld [vmem:[%s1138 + $0x74] sm:$0x1]
        %v1212 = vsel %vm1147, %v987, %v1211
        %1213 = vst [vmem:[%s1138 + $0x74] sm:$0x1] %v1212
        %v1214 = vld [vmem:[%s1138 + $0x78] sm:$0xf]
        %v1215 = vsel %vm1141, %v994, %v1214
        %1216 = vst [vmem:[%s1138 + $0x78] sm:$0xf] %v1215
        %1217 = vst.msk [vmem:[%s1138 + $0x7c] sm:$0xf] %vm248, %v1003
        %v1218 = vld [vmem:[%s1138 + $0x80] sm:$0x1]
        %v1219 = vsel %vm1147, %v1004, %v1218
        %1220 = vst [vmem:[%s1138 + $0x80] sm:$0x1] %v1219
        %v1221 = vld [vmem:[%s1138 + $0x84] sm:$0xf]
        %v1222 = vsel %vm1141, %v1011, %v1221
        %1223 = vst [vmem:[%s1138 + $0x84] sm:$0xf] %v1222
        %1224 = vst.msk [vmem:[%s1138 + $0x88] sm:$0xf] %vm248, %v1020
        %v1225 = vld [vmem:[%s1138 + $0x8c] sm:$0x1]
        %v1226 = vsel %vm1147, %v1021, %v1225
        %1227 = vst [vmem:[%s1138 + $0x8c] sm:$0x1] %v1226
        %v1228 = vld [vmem:[%s1138 + $0x90] sm:$0xf]
        %v1229 = vsel %vm1141, %v1028, %v1228
        %1230 = vst [vmem:[%s1138 + $0x90] sm:$0xf] %v1229
        %1231 = vst.msk [vmem:[%s1138 + $0x94] sm:$0xf] %vm248, %v1037
        %v1232 = vld [vmem:[%s1138 + $0x98] sm:$0x1]
        %v1233 = vsel %vm1147, %v1038, %v1232
        %1234 = vst [vmem:[%s1138 + $0x98] sm:$0x1] %v1233
        %v1235 = vld [vmem:[%s1138 + $0x9c] sm:$0xf]
        %v1236 = vsel %vm1141, %v1045, %v1235
        %1237 = vst [vmem:[%s1138 + $0x9c] sm:$0xf] %v1236
        %1238 = vst.msk [vmem:[%s1138 + $0xa0] sm:$0xf] %vm248, %v1054
        %v1239 = vld [vmem:[%s1138 + $0xa4] sm:$0x1]
        %v1240 = vsel %vm1147, %v1055, %v1239
        %1241 = vst [vmem:[%s1138 + $0xa4] sm:$0x1] %v1240
        %v1242 = vld [vmem:[%s1138 + $0xa8] sm:$0xf]
        %v1243 = vsel %vm1141, %v1062, %v1242
        %1244 = vst [vmem:[%s1138 + $0xa8] sm:$0xf] %v1243
        %1245 = vst.msk [vmem:[%s1138 + $0xac] sm:$0xf] %vm248, %v1071
        %v1246 = vld [vmem:[%s1138 + $0xb0] sm:$0x1]
        %v1247 = vsel %vm1147, %v1072, %v1246
        %1248 = vst [vmem:[%s1138 + $0xb0] sm:$0x1] %v1247
        %v1249 = vld [vmem:[%s1138 + $0xb4] sm:$0xf]
        %v1250 = vsel %vm1141, %v1079, %v1249
        %1251 = vst [vmem:[%s1138 + $0xb4] sm:$0xf] %v1250
        %1252 = vst.msk [vmem:[%s1138 + $0xb8] sm:$0xf] %vm248, %v1088
        %v1253 = vld [vmem:[%s1138 + $0xbc] sm:$0x1]
        %v1254 = vsel %vm1147, %v1089, %v1253
        %1255 = vst [vmem:[%s1138 + $0xbc] sm:$0x1] %v1254
        %p1256 = scmp.lt.s32.totalorder %s22, 1
        %s1257 = scalar_select %p1256, %s22, 1
        %p1258 = scmp.lt.s32.totalorder %s23, 0
        %s1259 = scalar_select %p1258, %s23, 0
        %s1260 = smul.addr %s1257, 54
        %s1261 = sadd.s32 %s1259, %s1260
        %s1262 = smul.addr %s1261, 4
        %s1263 = scalar_lea.vmem %s3, %s1262
        // Predicated region
        $region41: #{tpu_custom_call.1} parent=31 // pred_check
          %p1264 = pneg %p128
        $region42: #{tpu_custom_call.1} parent=31 // pred_check_branch
          %1266 = sbr.rel (%p1264) target = $region44
        $region43: #{tpu_custom_call.1} parent=31 // pred_region
          _
        $region44: #{tpu_custom_call.1} parent=31 // pred_fallthru
          _
      $region32: #{tpu_custom_call.1} parent=5 // pred_fallthru
        _
      %p1267 = scmp.le.s32.totalorder 2, %s13
      // Predicated region
      $region45: #{tpu_custom_call.1} parent=5 // pred_check
        %p1268 = pneg %p1267
      $region46: #{tpu_custom_call.1} parent=5 // pred_check_branch
        %1270 = sbr.rel (%p1268) target = $region48
      $region47: #{tpu_custom_call.1} parent=5 // pred_region
        %s1271 = ssub.s32 %s13, 2
        // Predicated region
        $region49: #{tpu_custom_call.1} parent=47 // pred_check
          %p1272 = pneg %p134
        $region50: #{tpu_custom_call.1} parent=47 // pred_check_branch
          %1274 = sbr.rel (%p1272) target = $region52
        $region51: #{tpu_custom_call.1} parent=47 // pred_region
          %p1275 = scmp.lt.s32.totalorder %s24, 1
          %s1276 = scalar_select %p1275, %s24, 1
          %p1277 = scmp.lt.s32.totalorder %s25, 0
          %s1278 = scalar_select %p1277, %s25, 0
          %s1279 = smul.addr %s1276, 54
          %s1280 = sadd.s32 %s1278, %s1279
          %s1281 = smul.addr %s1280, 4
          %s1282 = scalar_lea.vmem %s3, %s1281
        $region52: #{tpu_custom_call.1} parent=47 // pred_fallthru
          _
      $region48: #{tpu_custom_call.1} parent=5 // pred_fallthru
        _
    $region6: #{tpu_custom_call.1} parent=1 // loop_footer
      %s17 = sadd.s32 1, %s13
    $region7: #{tpu_custom_call.1} parent=1 // loop_footer_branch
      %12 = sbr.rel target = $region3
    $region8: #{tpu_custom_call.1} parent=1 // loop_exit
      _
    %1283 = vsyncpa [#allocation3], 1
    %s1284 = scalar_lea.sflag [#allocation3], 1
    %1285 = vsyncpa %s1284, 1
    %1286 = vsyncpa [#allocation5], 1

</llo_original>
